<compile_context>
chip_gen: v7x
topology: tpu7x:2x2x1
jax: 0.10.0
libtpu: 0.0.40
codegen_flags: <defaults>
</compile_context>

<pallas_src>
import functools

import jax
import jax.numpy as jnp
from jax.experimental import pallas as pl
from jax.experimental.pallas import tpu as pltpu


def _msae_kernel(scale_ref, x_ref, enc_ref, dec_ref, c_ref, latb_ref, outb_ref,
                 out_ref, z_ref, xc_ref, *rest, resident, acc_in_out):
    """Grid = (row tile i, d_sae tile j).  j is the reduction axis ("arbitrary")."""
    j = pl.program_id(1)
    acc_ref = out_ref if acc_in_out else rest[0]

    # Once per row tile: preprocess folded into one FMA, stage a bf16 copy of the
    # centered/scaled activations for the MXU, clear the reconstruction accumulator.
    @pl.when(j == 0)
    def _init():
        s = scale_ref[0]                                     # SMEM scalar
        xc = x_ref[...].astype(jnp.float32) * s - c_ref[...]
        xc_ref[...] = xc.astype(xc_ref.dtype)
        acc_ref[...] = jnp.zeros_like(acc_ref)

    # Weight slab for this d_sae tile:
    #   resident:  whole weight tensor lives in VMEM, dynamic leading-axis index j
    #   streaming: the BlockSpec already delivered slab j, leading axis has size 1
    w_idx = j if resident else 0
    enc = enc_ref[w_idx]                                     # (d_in, tsae) bf16
    dec = dec_ref[w_idx]                                     # (tsae, d_in) bf16

    # Encoder: (tm, d_in) @ (d_in, tsae), f32 accumulation on the MXU.
    z = jnp.dot(xc_ref[...], enc, preferred_element_type=jnp.float32)
    z = jnp.maximum(z + latb_ref[...], 0.0)                  # + latent_bias, relu
    z_ref[...] = z.astype(z_ref.dtype)                       # lane-dense latent tile

    # Decoder: accumulate partial reconstruction for this d_sae tile.
    acc_ref[...] += jnp.dot(z.astype(dec.dtype), dec,
                            preferred_element_type=jnp.float32)

    # Last d_sae tile: postprocess (multiply by 1/s, add folded bias) and store.
    @pl.when(j == pl.num_programs(1) - 1)
    def _finalize():
        inv_s = scale_ref[1]
        out_ref[...] = (acc_ref[...] * inv_s + outb_ref[...]).astype(out_ref.dtype)


def _round_up(v, m):
    return ((v + m - 1) // m) * m


def _vmem_budget_bytes():
    """Usable VMEM budget (leave headroom below physical; generation-aware)."""
    cap = 64 * 1024 * 1024                      # conservative default (v7x-sized)
    try:
        cap = int(pltpu.get_tpu_info().vmem_capacity_bytes)
    except Exception:
        pass
    return min(int(cap * 0.75), 100 * 1024 * 1024)


@functools.partial(jax.jit, static_argnames=("latent_dtype",))
def msae_forward(x, encoder, decoder, mean_center, pre_bias, latent_bias,
                 scaling_factor, *, latent_dtype=jnp.bfloat16):
    """Pallas implementation of MSAEWrapper.forward (no projection layers).

    Returns (sae_out, latent_acts) matching ForwardOutput semantics.
    """
    orig_shape = x.shape
    d_in = orig_shape[-1]
    d_sae = encoder.shape[1]

    x2 = x.reshape(-1, d_in)
    n = x2.shape[0]

    f32 = jnp.float32
    out_dtype = x2.dtype
    x_bytes = jnp.dtype(x2.dtype).itemsize
    out_bytes = jnp.dtype(out_dtype).itemsize
    lat_bytes = jnp.dtype(latent_dtype).itemsize
    acc_in_out = jnp.dtype(out_dtype) == jnp.float32   # accumulate directly in out

    budget = _vmem_budget_bytes()

    # ----------------- per-step VMEM footprint model (bytes) -----------------
    def footprint(tm_c, tsae_c, d_sae_pad_c, resident_c):
        fixed = 2 * (2 * d_in * 4 + tsae_c * 4)                 # folded bias vectors
        act = (2 * tm_c * d_in * x_bytes                        # x block (2 bufs)
               + 2 * tm_c * d_in * out_bytes                    # sae_out block
               + 2 * tm_c * tsae_c * lat_bytes                  # latent block
               + tm_c * d_in * 2                                # bf16 xc scratch
               + (0 if acc_in_out else tm_c * d_in * 4))        # f32 accumulator
        if resident_c:
            w = 2 * (2 * d_in * d_sae_pad_c * 2)                # whole enc+dec, bf16
        else:
            w = 2 * (2 * d_in * tsae_c * 2)                     # enc+dec slab, bf16
        return fixed + act + w

    # ----------------- tile selection (static shape math) --------------------
    if d_sae <= 1024:
        tsae_cands = [max(128, _round_up(d_sae, 128))]
    else:
        tsae_cands = [1024, 512, 256]
    tm_cands = [512, 384, 256, 128, 64, 32, 16, 8]

    sel = None
    for tsae_c in tsae_cands:
        d_sae_pad_c = _round_up(d_sae, tsae_c)
        # VMEM-resident weights whenever the (double-buffered) bf16 enc+dec fit
        # alongside reasonably sized activation tiles.
        resident_c = footprint(256, tsae_c, d_sae_pad_c, True) <= budget
        tm_c = None
        for cand in tm_cands:
            if footprint(cand, tsae_c, d_sae_pad_c, resident_c) <= budget:
                tm_c = cand
                break
        if tm_c is None:
            continue
        if sel is None or tm_c > sel[0]:
            sel = (tm_c, tsae_c, d_sae_pad_c, resident_c)
        if tm_c >= 256:
            break                     # big row tile at the largest feasible tsae
    if sel is None:                   # absolute fallback: tiny streaming config
        tsae_c = tsae_cands[-1]
        sel = (8, tsae_c, _round_up(d_sae, tsae_c), False)
    tm_sel, tsae, d_sae_pad, resident = sel
    tiles_sae = d_sae_pad // tsae

    # ----------------- row tiling: pad, keep >=2 tiles for megacore ----------
    tm_eff = min(tm_sel, _round_up(max(n, 1), 8))
    n_pad = _round_up(max(n, 1), tm_eff)
    if n > 8 and n_pad // tm_eff < 2:
        tm_eff = _round_up(-(-n // 2), 8)       # split rows so both TCs get work
        n_pad = _round_up(n, tm_eff)
    if n_pad != n:
        x2 = jnp.pad(x2, ((0, n_pad - n), (0, 0)))
    tiles_n = n_pad // tm_eff

    # ----------------- parameters: bf16 weights, folded f32 biases -----------
    s = jnp.asarray(scaling_factor, f32)
    inv_s = jnp.float32(1.0) / s
    mean_f = mean_center.astype(f32).reshape(1, d_in)
    preb_f = pre_bias.astype(f32).reshape(1, d_in)
    c2 = mean_f * s + preb_f                      # preprocess bias (folded)
    outb2 = preb_f * inv_s + mean_f               # postprocess bias (folded)
    scale_smem = jnp.stack([s, inv_s]).astype(f32)

    enc_bf = encoder.astype(jnp.bfloat16)
    dec_bf = decoder.astype(jnp.bfloat16)
    latb_f = latent_bias.astype(f32).reshape(1, d_sae)
    if d_sae_pad != d_sae:
        pad = d_sae_pad - d_sae
        enc_bf = jnp.pad(enc_bf, ((0, 0), (0, pad)))
        dec_bf = jnp.pad(dec_bf, ((0, pad), (0, 0)))
        latb_f = jnp.pad(latb_f, ((0, 0), (0, pad)))
    # One-time wrapper-side relayout so every per-tile slab is HBM-contiguous.
    enc_t = jnp.transpose(enc_bf.reshape(d_in, tiles_sae, tsae), (1, 0, 2))
    dec_t = dec_bf.reshape(tiles_sae, tsae, d_in)

    # ----------------- specs -------------------------------------------------
    if resident:
        enc_spec = pl.BlockSpec((tiles_sae, d_in, tsae), lambda i, j: (0, 0, 0))
        dec_spec = pl.BlockSpec((tiles_sae, tsae, d_in), lambda i, j: (0, 0, 0))
    else:
        enc_spec = pl.BlockSpec((1, d_in, tsae), lambda i, j: (j, 0, 0))
        dec_spec = pl.BlockSpec((1, tsae, d_in), lambda i, j: (j, 0, 0))

    scratch = [pltpu.VMEM((tm_eff, d_in), jnp.bfloat16)]       # staged x_c
    if not acc_in_out:
        scratch.append(pltpu.VMEM((tm_eff, d_in), jnp.float32))  # recon accumulator

    grid_spec = pltpu.PrefetchScalarGridSpec(
        num_scalar_prefetch=0,
        grid=(tiles_n, tiles_sae),
        in_specs=[
            pl.BlockSpec(memory_space=pltpu.MemorySpace.SMEM),     # [s, 1/s]
            pl.BlockSpec((tm_eff, d_in), lambda i, j: (i, 0)),     # x rows
            enc_spec,                                              # encoder
            dec_spec,                                              # decoder
            pl.BlockSpec((1, d_in), lambda i, j: (0, 0)),          # folded pre bias
            pl.BlockSpec((1, tsae), lambda i, j: (0, j)),          # latent_bias slab
            pl.BlockSpec((1, d_in), lambda i, j: (0, 0)),          # folded post bias
        ],
        out_specs=[
            pl.BlockSpec((tm_eff, d_in), lambda i, j: (i, 0)),     # sae_out
            pl.BlockSpec((tm_eff, tsae), lambda i, j: (i, j)),     # latent_acts
        ],
        scratch_shapes=scratch,
    )

    weight_bytes = 2 * d_in * d_sae_pad * 2
    cost = pl.CostEstimate(
        flops=4 * n_pad * d_in * d_sae_pad,          # two matmuls, 2 flops/MAC
        transcendentals=0,
        bytes_accessed=int(n_pad * d_in * x_bytes
                           + (1 if resident else tiles_n) * weight_bytes
                           + n_pad * d_in * out_bytes
                           + n_pad * d_sae_pad * lat_bytes),
    )

    kernel = functools.partial(_msae_kernel, resident=resident,
                               acc_in_out=acc_in_out)

    sae_out2, z2 = pl.pallas_call(
        kernel,
        grid_spec=grid_spec,
        out_shape=(
            jax.ShapeDtypeStruct((n_pad, d_in), out_dtype),
            jax.ShapeDtypeStruct((n_pad, d_sae_pad), latent_dtype),
        ),
        compiler_params=pltpu.CompilerParams(
            dimension_semantics=("parallel", "arbitrary"),
            vmem_limit_bytes=int(budget)),
        cost_estimate=cost,
    )(scale_smem, x2, enc_t, dec_t, c2, latb_f, outb2)

    sae_out = sae_out2[:n].reshape(orig_shape[:-1] + (d_in,))
    latent_acts = z2[:n, :d_sae].reshape(orig_shape[:-1] + (d_sae,))
    return sae_out, latent_acts


# ----------------------------- references -----------------------------------
def _reference_forward_f32(x, encoder, decoder, mean_center, pre_bias,
                           latent_bias, scaling_factor):
    """Plain-JAX f32 reference mirroring the PyTorch forward."""
    orig_shape = x.shape
    x2 = x.reshape(-1, orig_shape[-1]).astype(jnp.float32)
    x_prep = (x2 - mean_center) * scaling_factor
    z = jnp.maximum((x_prep - pre_bias) @ encoder + latent_bias, 0.0)
    recon = z @ decoder + pre_bias
    out = recon / scaling_factor + mean_center
    return (out.reshape(orig_shape[:-1] + (out.shape[-1],)),
            z.reshape(orig_shape[:-1] + (z.shape[-1],)))


def _reference_forward_bf16(x, encoder, decoder, mean_center, pre_bias,
                            latent_bias, scaling_factor):
    """Reference with the same bf16 quantization points as the kernel."""
    orig_shape = x.shape
    f32, bf16 = jnp.float32, jnp.bfloat16
    x2 = x.reshape(-1, orig_shape[-1]).astype(f32)
    s = jnp.asarray(scaling_factor, f32)
    inv_s = jnp.float32(1.0) / s
    enc = encoder.astype(bf16).astype(f32)
    dec = decoder.astype(bf16).astype(f32)
    c = mean_center.astype(f32) * s + pre_bias.astype(f32)
    outb = pre_bias.astype(f32) * inv_s + mean_center.astype(f32)
    xc = (x2 * s - c).astype(bf16).astype(f32)
    z = jnp.maximum(xc @ enc + latent_bias.astype(f32), 0.0)
    zd = z.astype(bf16).astype(f32)
    out = (zd @ dec) * inv_s + outb
    return (out.reshape(orig_shape[:-1] + (out.shape[-1],)),
            z.reshape(orig_shape[:-1] + (z.shape[-1],)))


if __name__ == "__main__":
    # Small, module-consistent shapes: tokens (2, 8) with d_in=32, d_sae=64.
    B, S, D_IN, D_SAE = 2, 8, 32, 64

    key = jax.random.PRNGKey(0)
    k_x, k_enc, k_dec, k_mean, k_preb, k_latb = jax.random.split(key, 6)

    x = jax.random.normal(k_x, (B, S, D_IN), dtype=jnp.float32)

    # Deterministic synthetic "checkpoint" parameters (shapes per SimpleMSAEModel).
    encoder = jax.random.normal(k_enc, (D_IN, D_SAE), dtype=jnp.float32) * 0.1
    decoder = jax.random.normal(k_dec, (D_SAE, D_IN), dtype=jnp.float32) * 0.1
    mean_center = jax.random.normal(k_mean, (D_IN,), dtype=jnp.float32) * 0.05
    pre_bias = jax.random.normal(k_preb, (D_IN,), dtype=jnp.float32) * 0.05
    latent_bias = jax.random.normal(k_latb, (D_SAE,), dtype=jnp.float32) * 0.05
    scaling_factor = 1.7  # checkpoint['scaling_factor'] (scalar)

    sae_out, latent_acts = msae_forward(
        x, encoder, decoder, mean_center, pre_bias, latent_bias, scaling_factor)
    jax.block_until_ready((sae_out, latent_acts))

    assert sae_out.shape == (B, S, D_IN)
    assert latent_acts.shape == (B, S, D_SAE)

    # Tight check against a reference quantized at the same points as the kernel.
    ref_out_q, ref_z_q = _reference_forward_bf16(
        x, encoder, decoder, mean_center, pre_bias, latent_bias, scaling_factor)
    assert jnp.allclose(sae_out.astype(jnp.float32), ref_out_q, atol=2e-3, rtol=2e-3)
    assert jnp.allclose(latent_acts.astype(jnp.float32), ref_z_q, atol=1e-2, rtol=1e-2)

    # Loose check against the pure-f32 PyTorch-semantics reference (bf16 weights
    # on the MXU introduce ~0.4% relative rounding).
    ref_out, ref_z = _reference_forward_f32(
        x, encoder, decoder, mean_center, pre_bias, latent_bias, scaling_factor)
    assert jnp.allclose(sae_out.astype(jnp.float32), ref_out, atol=5e-2, rtol=5e-2)
    assert jnp.allclose(latent_acts.astype(jnp.float32), ref_z, atol=5e-2, rtol=5e-2)

    # TODO(synk): MSAEWrapper.encode's per-sample variable-length top-k + boolean
    # masking (ragged padding), the quantile threshold in get_feature_activations,
    # and manipulate_features' dtype-dispatched masking have no clean static-shape
    # Pallas equivalent; only forward() (dense latents + reconstruction) is
    # implemented here.
    print("KERNEL_OK")
</pallas_src>

<mosaic_0001>
module attributes {stable_mosaic.version = 11 : i64} {
  func.func @_msae_kernel(%arg0: i32, %arg1: i32, %arg2: memref<2xf32, #tpu.memory_space<smem>>, %arg3: memref<8x32xf32, #tpu.memory_space<vmem>>, %arg4: memref<1x32x128xbf16, #tpu.memory_space<vmem>>, %arg5: memref<1x128x32xbf16, #tpu.memory_space<vmem>>, %arg6: memref<1x32xf32, #tpu.memory_space<vmem>>, %arg7: memref<1x128xf32, #tpu.memory_space<vmem>>, %arg8: memref<1x32xf32, #tpu.memory_space<vmem>>, %arg9: memref<8x32xf32, #tpu.memory_space<vmem>>, %arg10: memref<8x128xbf16, #tpu.memory_space<vmem>>, %arg11: memref<8x32xbf16, #tpu.memory_space<vmem>>) attributes {dimension_semantics = [#tpu.dimension_semantics<parallel>, #tpu.dimension_semantics<arbitrary>], iteration_bounds = array<i64: 2, 1>, scalar_prefetch = 0 : i64, scratch_operands = 1 : i64, tpu.core_type = #tpu.core_type<tc>, window_params = [{transform_indices = @transform_0, window_bounds = array<i64: 2>}, {transform_indices = @transform_1, window_bounds = array<i64: 8, 32>}, {pipeline_mode = #tpu.pipeline_mode<synchronous>, transform_indices = @transform_2, window_bounds = array<i64: 1, 32, 128>}, {pipeline_mode = #tpu.pipeline_mode<synchronous>, transform_indices = @transform_3, window_bounds = array<i64: 1, 128, 32>}, {pipeline_mode = #tpu.pipeline_mode<synchronous>, transform_indices = @transform_4, window_bounds = array<i64: 1, 32>}, {transform_indices = @transform_5, window_bounds = array<i64: 1, 128>}, {pipeline_mode = #tpu.pipeline_mode<synchronous>, transform_indices = @transform_6, window_bounds = array<i64: 1, 32>}, {transform_indices = @transform_7, window_bounds = array<i64: 8, 32>}, {transform_indices = @transform_8, window_bounds = array<i64: 8, 128>}]} {
    %c0_i32 = arith.constant 0 : i32
    %0 = arith.cmpi eq, %arg1, %c0_i32 : i32
    %1 = arith.extui %0 : i1 to i32
    %c0_i32_0 = arith.constant 0 : i32
    %2 = arith.cmpi ne, %1, %c0_i32_0 : i32
    scf.if %2 {
      %c0_18 = arith.constant 0 : index
      %26 = memref.load %arg2[%c0_18] : memref<2xf32, #tpu.memory_space<smem>>
      %c0_19 = arith.constant 0 : index
      %c0_20 = arith.constant 0 : index
      %27 = vector.load %arg3[%c0_19, %c0_20] : memref<8x32xf32, #tpu.memory_space<vmem>>, vector<8x32xf32>
      %28 = vector.broadcast %26 : f32 to vector<8x32xf32>
      %29 = arith.mulf %27, %28 : vector<8x32xf32>
      %c0_21 = arith.constant 0 : index
      %c0_22 = arith.constant 0 : index
      %30 = vector.load %arg6[%c0_21, %c0_22] : memref<1x32xf32, #tpu.memory_space<vmem>>, vector<1x32xf32>
      %31 = vector.broadcast %30 : vector<1x32xf32> to vector<8x32xf32>
      %32 = arith.subf %29, %31 : vector<8x32xf32>
      %33 = arith.truncf %32 : vector<8x32xf32> to vector<8x32xbf16>
      %c0_23 = arith.constant 0 : index
      %c0_24 = arith.constant 0 : index
      %34 = vector.load %arg11[%c0_23, %c0_24] : memref<8x32xbf16, #tpu.memory_space<vmem>>, vector<8x32xbf16>
      tpu.vector_store %arg11[%c0_23, %c0_24], %33 {strides = array<i32>} : memref<8x32xbf16, #tpu.memory_space<vmem>>, vector<8x32xbf16>,
      %cst_25 = arith.constant 0.000000e+00 : f32
      %35 = vector.broadcast %cst_25 : f32 to vector<8x32xf32>
      %c0_26 = arith.constant 0 : index
      %c0_27 = arith.constant 0 : index
      %36 = vector.load %arg9[%c0_26, %c0_27] : memref<8x32xf32, #tpu.memory_space<vmem>>, vector<8x32xf32>
      tpu.vector_store %arg9[%c0_26, %c0_27], %35 {strides = array<i32>} : memref<8x32xf32, #tpu.memory_space<vmem>>, vector<8x32xf32>,
    } else {
    }
    %3 = arith.index_cast %arg1 : i32 to index
    %c0 = arith.constant 0 : index
    %c0_1 = arith.constant 0 : index
    %4 = vector.load %arg4[%3, %c0, %c0_1] : memref<1x32x128xbf16, #tpu.memory_space<vmem>>, vector<1x32x128xbf16>
    %5 = vector.shape_cast %4 : vector<1x32x128xbf16> to vector<32x128xbf16>
    %6 = arith.index_cast %arg1 : i32 to index
    %c0_2 = arith.constant 0 : index
    %c0_3 = arith.constant 0 : index
    %7 = vector.load %arg5[%6, %c0_2, %c0_3] : memref<1x128x32xbf16, #tpu.memory_space<vmem>>, vector<1x128x32xbf16>
    %8 = vector.shape_cast %7 : vector<1x128x32xbf16> to vector<128x32xbf16>
    %c0_4 = arith.constant 0 : index
    %c0_5 = arith.constant 0 : index
    %9 = vector.load %arg11[%c0_4, %c0_5] : memref<8x32xbf16, #tpu.memory_space<vmem>>, vector<8x32xbf16>
    %cst = arith.constant dense<0.000000e+00> : vector<8x128xf32>
    %10 = tpu.matmul %9, %5, %cst {dimension_numbers = #tpu.dot_dimension_numbers<[1], [0], [0], [1], [0, 0, 1, 1], [], []>} : vector<8x32xbf16>, vector<32x128xbf16>, vector<8x128xf32> -> vector<8x128xf32>
    %c0_6 = arith.constant 0 : index
    %c0_7 = arith.constant 0 : index
    %11 = vector.load %arg7[%c0_6, %c0_7] : memref<1x128xf32, #tpu.memory_space<vmem>>, vector<1x128xf32>
    %12 = vector.broadcast %11 : vector<1x128xf32> to vector<8x128xf32>
    %13 = arith.addf %10, %12 : vector<8x128xf32>
    %cst_8 = arith.constant 0.000000e+00 : f32
    %14 = vector.broadcast %cst_8 : f32 to vector<8x128xf32>
    %15 = arith.maximumf %13, %14 : vector<8x128xf32>
    %16 = arith.truncf %15 : vector<8x128xf32> to vector<8x128xbf16>
    %c0_9 = arith.constant 0 : index
    %c0_10 = arith.constant 0 : index
    %17 = vector.load %arg10[%c0_9, %c0_10] : memref<8x128xbf16, #tpu.memory_space<vmem>>, vector<8x128xbf16>
    tpu.vector_store %arg10[%c0_9, %c0_10], %16 {strides = array<i32>} : memref<8x128xbf16, #tpu.memory_space<vmem>>, vector<8x128xbf16>,
    %c0_11 = arith.constant 0 : index
    %c0_12 = arith.constant 0 : index
    %18 = vector.load %arg9[%c0_11, %c0_12] : memref<8x32xf32, #tpu.memory_space<vmem>>, vector<8x32xf32>
    %19 = arith.truncf %15 : vector<8x128xf32> to vector<8x128xbf16>
    %cst_13 = arith.constant dense<0.000000e+00> : vector<8x32xf32>
    %20 = tpu.matmul %19, %8, %cst_13 {dimension_numbers = #tpu.dot_dimension_numbers<[1], [0], [0], [1], [0, 0, 1, 1], [], []>} : vector<8x128xbf16>, vector<128x32xbf16>, vector<8x32xf32> -> vector<8x32xf32>
    %21 = arith.addf %18, %20 : vector<8x32xf32>
    %c0_14 = arith.constant 0 : index
    %c0_15 = arith.constant 0 : index
    %22 = vector.load %arg9[%c0_14, %c0_15] : memref<8x32xf32, #tpu.memory_space<vmem>>, vector<8x32xf32>
    tpu.vector_store %arg9[%c0_14, %c0_15], %21 {strides = array<i32>} : memref<8x32xf32, #tpu.memory_space<vmem>>, vector<8x32xf32>,
    %c0_i32_16 = arith.constant 0 : i32
    %23 = arith.cmpi eq, %arg1, %c0_i32_16 : i32
    %24 = arith.extui %23 : i1 to i32
    %c0_i32_17 = arith.constant 0 : i32
    %25 = arith.cmpi ne, %24, %c0_i32_17 : i32
    scf.if %25 {
      %c1 = arith.constant 1 : index
      %26 = memref.load %arg2[%c1] : memref<2xf32, #tpu.memory_space<smem>>
      %c0_18 = arith.constant 0 : index
      %c0_19 = arith.constant 0 : index
      %27 = vector.load %arg9[%c0_18, %c0_19] : memref<8x32xf32, #tpu.memory_space<vmem>>, vector<8x32xf32>
      %28 = vector.broadcast %26 : f32 to vector<8x32xf32>
      %29 = arith.mulf %27, %28 : vector<8x32xf32>
      %c0_20 = arith.constant 0 : index
      %c0_21 = arith.constant 0 : index
      %30 = vector.load %arg8[%c0_20, %c0_21] : memref<1x32xf32, #tpu.memory_space<vmem>>, vector<1x32xf32>
      %31 = vector.broadcast %30 : vector<1x32xf32> to vector<8x32xf32>
      %32 = arith.addf %29, %31 : vector<8x32xf32>
      %c0_22 = arith.constant 0 : index
      %c0_23 = arith.constant 0 : index
      %33 = vector.load %arg9[%c0_22, %c0_23] : memref<8x32xf32, #tpu.memory_space<vmem>>, vector<8x32xf32>
      tpu.vector_store %arg9[%c0_22, %c0_23], %32 {strides = array<i32>} : memref<8x32xf32, #tpu.memory_space<vmem>>, vector<8x32xf32>,
    } else {
    }
    return
  }
  func.func @transform_0(%arg0: i32, %arg1: i32) -> i32 {
    %c0_i32 = arith.constant 0 : i32
    %c0_i32_0 = arith.constant 0 : i32
    return %c0_i32 : i32
  }
  func.func @transform_1(%arg0: i32, %arg1: i32) -> (i32, i32) {
    %c0_i32 = arith.constant 0 : i32
    %c0_i32_0 = arith.constant 0 : i32
    return %arg0, %c0_i32 : i32, i32
  }
  func.func @transform_2(%arg0: i32, %arg1: i32) -> (i32, i32, i32) {
    %c0_i32 = arith.constant 0 : i32
    %c0_i32_0 = arith.constant 0 : i32
    %c0_i32_1 = arith.constant 0 : i32
    %c0_i32_2 = arith.constant 0 : i32
    return %c0_i32, %c0_i32_0, %c0_i32_1 : i32, i32, i32
  }
  func.func @transform_3(%arg0: i32, %arg1: i32) -> (i32, i32, i32) {
    %c0_i32 = arith.constant 0 : i32
    %c0_i32_0 = arith.constant 0 : i32
    %c0_i32_1 = arith.constant 0 : i32
    %c0_i32_2 = arith.constant 0 : i32
    return %c0_i32, %c0_i32_0, %c0_i32_1 : i32, i32, i32
  }
  func.func @transform_4(%arg0: i32, %arg1: i32) -> (i32, i32) {
    %c0_i32 = arith.constant 0 : i32
    %c0_i32_0 = arith.constant 0 : i32
    %c0_i32_1 = arith.constant 0 : i32
    return %c0_i32, %c0_i32_0 : i32, i32
  }
  func.func @transform_5(%arg0: i32, %arg1: i32) -> (i32, i32) {
    %c0_i32 = arith.constant 0 : i32
    %c0_i32_0 = arith.constant 0 : i32
    return %c0_i32, %arg1 : i32, i32
  }
  func.func @transform_6(%arg0: i32, %arg1: i32) -> (i32, i32) {
    %c0_i32 = arith.constant 0 : i32
    %c0_i32_0 = arith.constant 0 : i32
    %c0_i32_1 = arith.constant 0 : i32
    return %c0_i32, %c0_i32_0 : i32, i32
  }
  func.func @transform_7(%arg0: i32, %arg1: i32) -> (i32, i32) {
    %c0_i32 = arith.constant 0 : i32
    %c0_i32_0 = arith.constant 0 : i32
    return %arg0, %c0_i32 : i32, i32
  }
  func.func @transform_8(%arg0: i32, %arg1: i32) -> (i32, i32) {
    %c0_i32 = arith.constant 0 : i32
    return %arg0, %arg1 : i32, i32
  }
}

</mosaic_0001>

<llo_original>
// kernel: msae_forward.1
$region0: #{msae_forward.1}
  #allocation0 [shape = 'u32[]', space=smem, size = 0x4, offset = 0x4, fixed_abs, tag = 'smem constant byte address 0x4 - core index']
  #allocation1 [shape = 'u32[144,128]{1,0:T(1,128)}', space=vmem, size = 0x12000, scoped, tag = 'internal scratch']
  #allocation2 [shape = 'bf16[8,32]{1,0:T(8,128)(2,1)}', space=vmem, size = 0x800, scoped, tag = 'scratch operand']
  %s0 = inlined_call_operand.vmem [shape: f32[2], index: 0, kind: input, shape index: {}]
  %s1 = inlined_call_operand.vmem [shape: f32[16,32], index: 1, kind: input, shape index: {}]
  %s2 = inlined_call_operand.vmem [shape: bf16[1,32,128], index: 2, kind: input, shape index: {}]
  %s3 = inlined_call_operand.vmem [shape: bf16[1,128,32], index: 3, kind: input, shape index: {}]
  %s4 = inlined_call_operand.vmem [shape: f32[1,32], index: 4, kind: input, shape index: {}]
  %s5 = inlined_call_operand.vmem [shape: f32[1,128], index: 5, kind: input, shape index: {}]
  %s6 = inlined_call_operand.vmem [shape: f32[1,32], index: 6, kind: input, shape index: {}]
  %s7 = inlined_call_operand.hbm [shape: f32[16,32], index: 7, kind: output, shape index: {0}]
  %s8 = inlined_call_operand.vmem [shape: bf16[16,128], index: 8, kind: output, shape index: {1}]
  %9 = xla_tuple %s7, %s8
  %s10 = sld [smem:[#allocation0]]
  $region81: #{msae_forward.1} parent=0
    _
  %s12 = ssub.s32 1, %s10
  %s13 = scalar_select 0, %s12, %s10
  $region1: #{msae_forward.1} parent=0
    #allocation3 [shape = 'u8[512]{0}', space=smem, size = 0x200, scoped, tag = 'input window, operand 0, single buffered']
    #allocation4 [shape = 's32[2]{0}', space=sflag, size = 0x8, scoped, tag = 'scoped memory for msae_forward.1']
    #allocation5 [shape = 's32[2]{0}', space=sflag, size = 0x8, scoped, tag = 'scoped memory for msae_forward.1']
    #allocation6 [shape = 'u8[8192]{0}', space=vmem, size = 0x2000, scoped, tag = 'output window, operand 0']
    %14 = vsyncpa [#allocation5], 0
    %15 = vsyncpa [#allocation4], 0
    %s16 = scalar_lea.sflag [#allocation4], 1
    %17 = vsyncpa %s16, 0
    loop: start=0, step=1, limit=4
    $region2: #{msae_forward.1} parent=1 // loop_pre_header
      _
    $region3: #{msae_forward.1} parent=1 // loop_header
      %s19 = sphi 0, %s23
      %p20 = scmp.ge.s32.totalorder %s19, 4
      %s26 = sphi 0, %s38
      %s27 = sphi 0, %s34
      %s28 = sphi 0, %s26
      %s29 = sphi 0, %s27
      %s30 = sphi 0, %s28
      %s31 = sphi 0, %s29
      %s39 = sphi 0, %s39
      %s41 = sphi 0, %s39
      %s42 = sphi 0, %s41
      %s56 = sphi 0, %s42
      %s62 = sphi 0, %s64
      %s65 = sphi 0, %s62
      %s66 = sphi 0, %s65
      %s82 = sphi 0, %s66
      %s86 = sphi 0, %s86
      %s88 = sphi 0, %s86
      %s89 = sphi 0, %s88
      %s103 = sphi 0, %s89
      %s107 = sphi 0, %s107
      %s109 = sphi 0, %s107
      %s110 = sphi 0, %s109
      %s124 = sphi 0, %s110
      %s128 = sphi 0, %s128
      %s130 = sphi 0, %s128
      %s131 = sphi 0, %s130
      %s145 = sphi 0, %s131
      %s151 = sphi 0, %s153
      %s154 = sphi 0, %s151
      %s155 = sphi 0, %s154
      %s171 = sphi 0, %s155
      %s175 = sphi 0, %s175
      %s177 = sphi 0, %s175
      %s178 = sphi 0, %s177
      %s192 = sphi 0, %s178
      %s198 = sphi 0, %s200
      %s201 = sphi 0, %s198
      %s202 = sphi 0, %s201
      %s218 = sphi 0, %s202
      %s226 = sphi 0, %s228
      %s229 = sphi 0, %s226
      %s230 = sphi 0, %s229
      %s246 = sphi 0, %s230
    $region4: #{msae_forward.1} parent=1 // loop_header_branch
      %22 = sbr.rel (%p20) target = $region8
    $region5: #{msae_forward.1} parent=1 // loop_body
      %s24 = ssub.s32 %s19, 1
      %s25 = ssub.s32 %s19, 2
      %s32 = sadd.s32 1, %s27
      %p33 = scmp.ge.s32.totalorder %s32, 1
      %s34 = scalar_select %p33, 0, %s32
      %s35 = sadd.s32 1, %s26
      %s36 = scalar_select %p33, %s35, %s26
      %p37 = scmp.ge.s32.totalorder %s36, 2
      %s38 = scalar_select %p37, 0, %s36
      %s40 = sadd.s32 %s39, 1
      %p43 = scmp.eq.s32.totalorder %s19, 1
      %p44 = scmp.ne.s32.totalorder %s39, %s41
      %p45 = scmp.eq.s32.totalorder %s19, 0
      %p46 = por %p44, %p45
      %p47 = scmp.ne.s32.totalorder %s39, %s41
      %p48 = scmp.eq.s32.totalorder %s24, 1
      %p49 = por %p47, %p48
      %p50 = scmp.ne.s32.totalorder %s41, %s42
      %p51 = scmp.eq.s32.totalorder %s24, 0
      %p52 = por %p50, %p51
      %p53 = scmp.ne.s32.totalorder %s41, %s42
      %p54 = scmp.eq.s32.totalorder %s25, 1
      %p55 = por %p53, %p54
      %p57 = scmp.ne.s32.totalorder %s42, %s56
      %p58 = scmp.eq.s32.totalorder %s25, 0
      %p59 = por %p57, %p58
      %s60 = ssub.s32 %s26, %s38
      %p61 = scmp.eq.s32.totalorder %s60, 0
      %s63 = sadd.s32 %s62, 1
      %s64 = scalar_select %p61, %s62, %s63
      %p67 = pneg %p61
      %p68 = scmp.eq.s32.totalorder %s19, 1
      %p69 = por %p67, %p68
      %p70 = scmp.ne.s32.totalorder %s62, %s65
      %p71 = scmp.eq.s32.totalorder %s19, 0
      %p72 = por %p70, %p71
      %p73 = scmp.ne.s32.totalorder %s62, %s65
      %p74 = scmp.eq.s32.totalorder %s24, 1
      %p75 = por %p73, %p74
      %p76 = scmp.ne.s32.totalorder %s65, %s66
      %p77 = scmp.eq.s32.totalorder %s24, 0
      %p78 = por %p76, %p77
      %p79 = scmp.ne.s32.totalorder %s65, %s66
      %p80 = scmp.eq.s32.totalorder %s25, 1
      %p81 = por %p79, %p80
      %p83 = scmp.ne.s32.totalorder %s66, %s82
      %p84 = scmp.eq.s32.totalorder %s25, 0
      %p85 = por %p83, %p84
      %s87 = sadd.s32 %s86, 1
      %p90 = scmp.eq.s32.totalorder %s19, 1
      %p91 = scmp.ne.s32.totalorder %s86, %s88
      %p92 = scmp.eq.s32.totalorder %s19, 0
      %p93 = por %p91, %p92
      %p94 = scmp.ne.s32.totalorder %s86, %s88
      %p95 = scmp.eq.s32.totalorder %s24, 1
      %p96 = por %p94, %p95
      %p97 = scmp.ne.s32.totalorder %s88, %s89
      %p98 = scmp.eq.s32.totalorder %s24, 0
      %p99 = por %p97, %p98
      %p100 = scmp.ne.s32.totalorder %s88, %s89
      %p101 = scmp.eq.s32.totalorder %s25, 1
      %p102 = por %p100, %p101
      %p104 = scmp.ne.s32.totalorder %s89, %s103
      %p105 = scmp.eq.s32.totalorder %s25, 0
      %p106 = por %p104, %p105
      %s108 = sadd.s32 %s107, 1
      %p111 = scmp.eq.s32.totalorder %s19, 1
      %p112 = scmp.ne.s32.totalorder %s107, %s109
      %p113 = scmp.eq.s32.totalorder %s19, 0
      %p114 = por %p112, %p113
      %p115 = scmp.ne.s32.totalorder %s107, %s109
      %p116 = scmp.eq.s32.totalorder %s24, 1
      %p117 = por %p115, %p116
      %p118 = scmp.ne.s32.totalorder %s109, %s110
      %p119 = scmp.eq.s32.totalorder %s24, 0
      %p120 = por %p118, %p119
      %p121 = scmp.ne.s32.totalorder %s109, %s110
      %p122 = scmp.eq.s32.totalorder %s25, 1
      %p123 = por %p121, %p122
      %p125 = scmp.ne.s32.totalorder %s110, %s124
      %p126 = scmp.eq.s32.totalorder %s25, 0
      %p127 = por %p125, %p126
      %s129 = sadd.s32 %s128, 1
      %p132 = scmp.eq.s32.totalorder %s19, 1
      %p133 = scmp.ne.s32.totalorder %s128, %s130
      %p134 = scmp.eq.s32.totalorder %s19, 0
      %p135 = por %p133, %p134
      %p136 = scmp.ne.s32.totalorder %s128, %s130
      %p137 = scmp.eq.s32.totalorder %s24, 1
      %p138 = por %p136, %p137
      %p139 = scmp.ne.s32.totalorder %s130, %s131
      %p140 = scmp.eq.s32.totalorder %s24, 0
      %p141 = por %p139, %p140
      %p142 = scmp.ne.s32.totalorder %s130, %s131
      %p143 = scmp.eq.s32.totalorder %s25, 1
      %p144 = por %p142, %p143
      %p146 = scmp.ne.s32.totalorder %s131, %s145
      %p147 = scmp.eq.s32.totalorder %s25, 0
      %p148 = por %p146, %p147
      %s149 = ssub.s32 %s27, %s34
      %p150 = scmp.eq.s32.totalorder %s149, 0
      %s152 = sadd.s32 %s151, 1
      %s153 = scalar_select %p150, %s151, %s152
      %p156 = pneg %p150
      %p157 = scmp.eq.s32.totalorder %s19, 1
      %p158 = por %p156, %p157
      %p159 = scmp.ne.s32.totalorder %s151, %s154
      %p160 = scmp.eq.s32.totalorder %s19, 0
      %p161 = por %p159, %p160
      %p162 = scmp.ne.s32.totalorder %s151, %s154
      %p163 = scmp.eq.s32.totalorder %s24, 1
      %p164 = por %p162, %p163
      %p165 = scmp.ne.s32.totalorder %s154, %s155
      %p166 = scmp.eq.s32.totalorder %s24, 0
      %p167 = por %p165, %p166
      %p168 = scmp.ne.s32.totalorder %s154, %s155
      %p169 = scmp.eq.s32.totalorder %s25, 1
      %p170 = por %p168, %p169
      %p172 = scmp.ne.s32.totalorder %s155, %s171
      %p173 = scmp.eq.s32.totalorder %s25, 0
      %p174 = por %p172, %p173
      %s176 = sadd.s32 %s175, 1
      %p179 = scmp.eq.s32.totalorder %s19, 1
      %p180 = scmp.ne.s32.totalorder %s175, %s177
      %p181 = scmp.eq.s32.totalorder %s19, 0
      %p182 = por %p180, %p181
      %p183 = scmp.ne.s32.totalorder %s175, %s177
      %p184 = scmp.eq.s32.totalorder %s24, 1
      %p185 = por %p183, %p184
      %p186 = scmp.ne.s32.totalorder %s177, %s178
      %p187 = scmp.eq.s32.totalorder %s24, 0
      %p188 = por %p186, %p187
      %p189 = scmp.ne.s32.totalorder %s177, %s178
      %p190 = scmp.eq.s32.totalorder %s25, 1
      %p191 = por %p189, %p190
      %p193 = scmp.ne.s32.totalorder %s178, %s192
      %p194 = scmp.eq.s32.totalorder %s25, 0
      %p195 = por %p193, %p194
      %s196 = ssub.s32 %s26, %s38
      %p197 = scmp.eq.s32.totalorder %s196, 0
      %s199 = sadd.s32 %s198, 1
      %s200 = scalar_select %p197, %s198, %s199
      %p203 = pneg %p197
      %p204 = scmp.eq.s32.totalorder %s19, 1
      %p205 = por %p203, %p204
      %p206 = scmp.ne.s32.totalorder %s198, %s201
      %p207 = scmp.eq.s32.totalorder %s19, 0
      %p208 = por %p206, %p207
      %p209 = scmp.ne.s32.totalorder %s198, %s201
      %p210 = scmp.eq.s32.totalorder %s24, 1
      %p211 = por %p209, %p210
      %p212 = scmp.ne.s32.totalorder %s201, %s202
      %p213 = scmp.eq.s32.totalorder %s24, 0
      %p214 = por %p212, %p213
      %p215 = scmp.ne.s32.totalorder %s201, %s202
      %p216 = scmp.eq.s32.totalorder %s25, 1
      %p217 = por %p215, %p216
      %p219 = scmp.ne.s32.totalorder %s202, %s218
      %p220 = scmp.eq.s32.totalorder %s25, 0
      %p221 = por %p219, %p220
      %s222 = ssub.s32 %s26, %s38
      %s223 = ssub.s32 %s27, %s34
      %s224 = sor.u32 %s222, %s223
      %p225 = scmp.eq.s32.totalorder %s224, 0
      %s227 = sadd.s32 %s226, 1
      %s228 = scalar_select %p225, %s226, %s227
      %p231 = pneg %p225
      %p232 = scmp.eq.s32.totalorder %s19, 1
      %p233 = por %p231, %p232
      %p234 = scmp.ne.s32.totalorder %s226, %s229
      %p235 = scmp.eq.s32.totalorder %s19, 0
      %p236 = por %p234, %p235
      %p237 = scmp.ne.s32.totalorder %s226, %s229
      %p238 = scmp.eq.s32.totalorder %s24, 1
      %p239 = por %p237, %p238
      %p240 = scmp.ne.s32.totalorder %s229, %s230
      %p241 = scmp.eq.s32.totalorder %s24, 0
      %p242 = por %p240, %p241
      %p243 = scmp.ne.s32.totalorder %s229, %s230
      %p244 = scmp.eq.s32.totalorder %s25, 1
      %p245 = por %p243, %p244
      %p247 = scmp.ne.s32.totalorder %s230, %s246
      %p248 = scmp.eq.s32.totalorder %s25, 0
      %p249 = por %p247, %p248
      %p250 = scmp.le.s32.totalorder 1, %s19
      %p251 = scmp.lt.s32.totalorder %s19, 3
      %p252 = pnand %p250, %p251
      %p253 = pneg %p252
      // Predicated region
      $region9: #{msae_forward.1} parent=5 // pred_check
        _
      $region10: #{msae_forward.1} parent=5 // pred_check_branch
        %255 = sbr.rel (%p252) target = $region12
      $region11: #{msae_forward.1} parent=5 // pred_region
        %s256 = ssub.s32 %s19, 1
        // Predicated region
        $region13: #{msae_forward.1} parent=11 // pred_check
          %p257 = pneg %p52
        $region14: #{msae_forward.1} parent=11 // pred_check_branch
          %259 = sbr.rel (%p257) target = $region16
        $region15: #{msae_forward.1} parent=11 // pred_region
          %s261 = ssub.s32 16, 16
          %262 = vsyncadd [#allocation5], %s261
          %s264 = sshll.u32 %s0, 4
          %s265 = int_to_ptr.vmem [resolvable:$true] %s264
          %267 = dma.vmem_to_smem %s265, 16, [#allocation3], [#allocation5]
        $region16: #{msae_forward.1} parent=11 // pred_fallthru
          _
        // Predicated region
        $region17: #{msae_forward.1} parent=11 // pred_check
          %p268 = pneg %p99
        $region18: #{msae_forward.1} parent=11 // pred_check_branch
          %270 = sbr.rel (%p268) target = $region20
        $region19: #{msae_forward.1} parent=11 // pred_region
          _
        $region20: #{msae_forward.1} parent=11 // pred_fallthru
          _
        // Predicated region
        $region21: #{msae_forward.1} parent=11 // pred_check
          %p271 = pneg %p120
        $region22: #{msae_forward.1} parent=11 // pred_check_branch
          %273 = sbr.rel (%p271) target = $region24
        $region23: #{msae_forward.1} parent=11 // pred_region
          _
        $region24: #{msae_forward.1} parent=11 // pred_fallthru
          _
        // Predicated region
        $region25: #{msae_forward.1} parent=11 // pred_check
          %p274 = pneg %p141
        $region26: #{msae_forward.1} parent=11 // pred_check_branch
          %276 = sbr.rel (%p274) target = $region28
        $region27: #{msae_forward.1} parent=11 // pred_region
          _
        $region28: #{msae_forward.1} parent=11 // pred_fallthru
          _
        // Predicated region
        $region29: #{msae_forward.1} parent=11 // pred_check
          %p277 = pneg %p167
        $region30: #{msae_forward.1} parent=11 // pred_check_branch
          %279 = sbr.rel (%p277) target = $region32
        $region31: #{msae_forward.1} parent=11 // pred_region
          %p280 = scmp.lt.s32.totalorder %s29, 0
          %s281 = scalar_select %p280, %s29, 0
          %s282 = scalar_lea.vmem %s5, %s281
        $region32: #{msae_forward.1} parent=11 // pred_fallthru
          _
        // Predicated region
        $region33: #{msae_forward.1} parent=11 // pred_check
          %p283 = pneg %p188
        $region34: #{msae_forward.1} parent=11 // pred_check_branch
          %285 = sbr.rel (%p283) target = $region36
        $region35: #{msae_forward.1} parent=11 // pred_region
          _
        $region36: #{msae_forward.1} parent=11 // pred_fallthru
          _
      $region12: #{msae_forward.1} parent=5 // pred_fallthru
        _
      %p286 = scmp.lt.s32.totalorder %s19, 2
      // Predicated region
      $region37: #{msae_forward.1} parent=5 // pred_check
        %p287 = pneg %p286
      $region38: #{msae_forward.1} parent=5 // pred_check_branch
        %289 = sbr.rel (%p287) target = $region40
      $region39: #{msae_forward.1} parent=5 // pred_region
        // Predicated region
        $region41: #{msae_forward.1} parent=39 // pred_check
          %p290 = pneg %p72
        $region42: #{msae_forward.1} parent=39 // pred_check_branch
          %292 = sbr.rel (%p290) target = $region44
        $region43: #{msae_forward.1} parent=39 // pred_region
          %p293 = scmp.lt.s32.totalorder %s26, 1
          %s294 = scalar_select %p293, %s26, 1
          %s295 = smul.addr %s294, 8
          %s296 = scalar_lea.vmem %s1, %s295
        $region44: #{msae_forward.1} parent=39 // pred_fallthru
          _
      $region40: #{msae_forward.1} parent=5 // pred_fallthru
        _
      %p297 = scmp.le.s32.totalorder 1, %s19
      %p298 = scmp.lt.s32.totalorder %s19, 3
      %p299 = pnand %p297, %p298
      %p300 = pneg %p299
      // Predicated region
      $region45: #{msae_forward.1} parent=5 // pred_check
        _
      $region46: #{msae_forward.1} parent=5 // pred_check_branch
        %302 = sbr.rel (%p299) target = $region48
      $region47: #{msae_forward.1} parent=5 // pred_region
        %s303 = ssub.s32 %s19, 1
        // Predicated region
        $region49: #{msae_forward.1} parent=47 // pred_check
          %p304 = pneg %p52
        $region50: #{msae_forward.1} parent=47 // pred_check_branch
          %306 = sbr.rel (%p304) target = $region52
        $region51: #{msae_forward.1} parent=47 // pred_region
          %307 = dma.done [#allocation5], 16
        $region52: #{msae_forward.1} parent=47 // pred_fallthru
          _
        %308 = sfence
        %p309 = pneg %p52
        %p310 = pneg %p49
        %p311 = scmp.lt.s32.totalorder %s28, 1
        %s312 = scalar_select %p311, %s28, 1
        %s313 = smul.addr %s312, 8
        %s314 = scalar_lea.vmem %s1, %s313
        %p315 = pneg %p78
        %p316 = pneg %p75
        %p317 = pneg %p99
        %p318 = pneg %p96
        %p319 = pneg %p120
        %p320 = pneg %p117
        %p321 = pneg %p141
        %p322 = pneg %p138
        %p323 = scmp.lt.s32.totalorder %s29, 0
        %s324 = scalar_select %p323, %s29, 0
        %s325 = scalar_lea.vmem %s5, %s324
        %p326 = pneg %p167
        %p327 = pneg %p164
        %p328 = pneg %p188
        %p329 = pneg %p185
        %p330 = pneg %p214
        %p331 = pneg %p211
        %s332 = sand.u32 %s201, 1
        %s333 = scalar_lea.sflag [#allocation4], %s332
        %s334 = sand.u32 %s201, 1
        %s335 = smul.addr %s334, 8
        %s336 = scalar_lea.vmem [#allocation6], %s335
        %p337 = pneg %p242
        %p338 = pneg %p239
        %p339 = scmp.lt.s32.totalorder %s28, 1
        %s340 = scalar_select %p339, %s28, 1
        %p341 = scmp.lt.s32.totalorder %s29, 0
        %s342 = scalar_select %p341, %s29, 0
        %s343 = sadd.s32 %s342, %s340
        %s344 = smul.addr %s343, 4
        %s345 = scalar_lea.vmem %s8, %s344
        %p346 = scmp.lt.s32.totalorder %s28, 1
        %s347 = scalar_select %p346, %s28, 1
        %s348 = smul.addr %s347, 8
        %s349 = scalar_lea.vmem %s1, %s348
        %p350 = scmp.lt.s32.totalorder %s29, 0
        %s351 = scalar_select %p350, %s29, 0
        %s352 = scalar_lea.vmem %s5, %s351
        %p353 = scmp.lt.s32.totalorder %s28, 1
        %s354 = scalar_select %p353, %s28, 1
        %p355 = scmp.lt.s32.totalorder %s29, 0
        %s356 = scalar_select %p355, %s29, 0
        %s357 = sadd.s32 %s356, %s354
        %s358 = smul.addr %s357, 4
        %s359 = scalar_lea.vmem %s8, %s358
        %p361 = scmp.eq.s32.totalorder %s29, 0
        // Predicated region
        $region53: #{msae_forward.1} parent=47 // pred_check
          %p362 = pneg %p361
        $region54: #{msae_forward.1} parent=47 // pred_check_branch
          %364 = sbr.rel (%p362) target = $region56
        $region55: #{msae_forward.1} parent=47 // pred_region
          %s365 = sld [smem:[#allocation3]]
          %v366 = vld [vmem:[%s349] sm:$0xff]
          %v367 = vstv %s365
          %v368 = vmul.f32 %v366, %v367
          %v369 = vld [vmem:[%s4] sm:$0x1]
          %v371 = vlaneseq
          %v372 = vshrl.u32 %v371, 7
          %v373 = vsub.s32 0, %v372
          %v374 = vrot.slane %v369, %v373
          %v376 = vsub.f32 %v368, %v374
          %v377 = vpack.c.bf16 %v376, %v376
          %vm378 = vcmask 257024
          %379 = vst.msk [vmem:[#allocation2] sm:$0xf] %vm378, %v377
          %vm380 = vcmask 261120
          %381 = vst.msk [vmem:[%s336] sm:$0xff] %vm380, 0.0
        $region56: #{msae_forward.1} parent=47 // pred_fallthru
          _
        %s382 = smul.u32 %s29, 4
        %s383 = smul.addr %s382, 4
        %s384 = scalar_lea.vmem %s2, %s383
        %v385 = vld [vmem:[%s384] sm:$0xf]
        %v386 = vld [vmem:[%s384 + $0x4] sm:$0xf]
        %v387 = vld [vmem:[%s384 + $0x8] sm:$0xf]
        %v388 = vld [vmem:[%s384 + $0xc] sm:$0xf]
        %s389 = smul.u32 %s29, 16
        %s390 = smul.addr %s389, 4
        %s391 = scalar_lea.vmem %s3, %s390
        %v392 = vld [vmem:[%s391] sm:$0xf]
        %v393 = vld [vmem:[%s391 + $0x4] sm:$0xf]
        %v394 = vld [vmem:[%s391 + $0x8] sm:$0xf]
        %v395 = vld [vmem:[%s391 + $0xc] sm:$0xf]
        %v396 = vld [vmem:[%s391 + $0x10] sm:$0xf]
        %v397 = vld [vmem:[%s391 + $0x14] sm:$0xf]
        %v398 = vld [vmem:[%s391 + $0x18] sm:$0xf]
        %v399 = vld [vmem:[%s391 + $0x1c] sm:$0xf]
        %v400 = vld [vmem:[%s391 + $0x20] sm:$0xf]
        %v401 = vld [vmem:[%s391 + $0x24] sm:$0xf]
        %v402 = vld [vmem:[%s391 + $0x28] sm:$0xf]
        %v403 = vld [vmem:[%s391 + $0x2c] sm:$0xf]
        %v404 = vld [vmem:[%s391 + $0x30] sm:$0xf]
        %v405 = vld [vmem:[%s391 + $0x34] sm:$0xf]
        %v406 = vld [vmem:[%s391 + $0x38] sm:$0xf]
        %v407 = vld [vmem:[%s391 + $0x3c] sm:$0xf]
        %v408 = vld [vmem:[#allocation2] sm:$0xf]
        %v409 = vld [vmem:[%s352] sm:$0x1]
        %v411 = vlaneseq
        %v412 = vshrl.u32 %v411, 7
        %v413 = vsub.s32 0, %v412
        %v414 = vrot.slane %v409, %v413
        %v420 = vunpack.c.l.b16 %v385
        %v421 = vunpack.c.l.b16 %v386
        %v422 = vunpack.c.l.b16 %v387
        %v423 = vunpack.c.l.b16 %v388
        %v424 = vpack.c.b16 %v421, %v420
        %v425 = vpack.c.b16 %v423, %v422
        %vm428 = vcmask 261120
        %v430 = vsel %vm428, %v408, 0
        %432 = vmatprep.subr.bf16.mxu0 0
        %433 = vmatpush1.bf16.msra.mxu0 %v424
        %434 = vmatprep.subr.bf16.mxu0 0
        %435 = vmatpush1.bf16.msra.mxu0 %v425
        %436 = vmatprep.subr.bf16.mxu0 0
        %437 = vmatpush1.bf16.msra.mxu0 0
        %438 = vmatprep.subr.bf16.mxu0 0
        %439 = vmatpush1.bf16.msra.mxu0 0
        %440 = vmatprep.subr.bf16.mxu0 0
        %441 = vmatpush1.bf16.msra.mxu0 0
        %442 = vmatprep.subr.bf16.mxu0 0
        %443 = vmatpush1.bf16.msra.mxu0 0
        %444 = vmatprep.subr.bf16.mxu0 0
        %445 = vmatpush1.bf16.msra.mxu0 0
        %446 = vmatprep.subr.bf16.mxu0 0
        %447 = vmatpush1.bf16.msra.mxu0 0
        %448 = vmatprep.subr.bf16.mxu0 0
        %449 = vmatpush1.bf16.msra.mxu0 0
        %450 = vmatprep.subr.bf16.mxu0 0
        %451 = vmatpush1.bf16.msra.mxu0 0
        %452 = vmatprep.subr.bf16.mxu0 0
        %453 = vmatpush1.bf16.msra.mxu0 0
        %454 = vmatprep.subr.bf16.mxu0 0
        %455 = vmatpush1.bf16.msra.mxu0 0
        %456 = vmatprep.subr.bf16.mxu0 0
        %457 = vmatpush1.bf16.msra.mxu0 0
        %458 = vmatprep.subr.bf16.mxu0 0
        %459 = vmatpush1.bf16.msra.mxu0 0
        %460 = vmatprep.subr.bf16.mxu0 0
        %461 = vmatpush1.bf16.msra.mxu0 0
        %462 = vmatprep.subr.bf16.mxu0 0
        %463 = vmatpush1.bf16.msra.mxu0 0
        %464 = vmatprep.mubr.bf16.mxu0 0
        %465 = vmatmul.mubr.bf16.gmra.mrb[0].mxu0 %v430
        %v466 = vpop.f32.mrb[0].mxu0
        %v467 = vadd.f32 %v414, %v466
        %v468 = vpop.f32.mrb[0].mxu0
        %v469 = vpop.f32.mrb[0].mxu0
        %v470 = vpop.f32.mrb[0].mxu0
        %471 = vdwg.mxu0
        %v472 = vmax.f32 %v467, 0.0
        %v473 = vpack.c.bf16 %v472, %v472
        %474 = vst [vmem:[%s359] sm:$0xf] %v473
        %v475 = vld [vmem:[%s336] sm:$0xff]
        %v492 = vunpack.c.l.b16 %v392
        %v493 = vunpack.c.l.b16 %v393
        %v494 = vunpack.c.l.b16 %v394
        %v495 = vunpack.c.l.b16 %v395
        %v496 = vunpack.c.l.b16 %v396
        %v497 = vunpack.c.l.b16 %v397
        %v498 = vunpack.c.l.b16 %v398
        %v499 = vunpack.c.l.b16 %v399
        %v500 = vunpack.c.l.b16 %v400
        %v501 = vunpack.c.l.b16 %v401
        %v502 = vunpack.c.l.b16 %v402
        %v503 = vunpack.c.l.b16 %v403
        %v504 = vunpack.c.l.b16 %v404
        %v505 = vunpack.c.l.b16 %v405
        %v506 = vunpack.c.l.b16 %v406
        %v507 = vunpack.c.l.b16 %v407
        %v508 = vpack.c.b16 %v493, %v492
        %v509 = vpack.c.b16 %v495, %v494
        %v510 = vpack.c.b16 %v497, %v496
        %v511 = vpack.c.b16 %v499, %v498
        %v512 = vpack.c.b16 %v501, %v500
        %v513 = vpack.c.b16 %v503, %v502
        %v514 = vpack.c.b16 %v505, %v504
        %v515 = vpack.c.b16 %v507, %v506
        %524 = vmatprep.subr.bf16.mxu0 0
        %525 = vmatpush1.bf16.msra.mxu0 %v508
        %526 = vmatprep.subr.bf16.mxu0 0
        %527 = vmatpush1.bf16.msra.mxu0 %v509
        %528 = vmatprep.subr.bf16.mxu0 0
        %529 = vmatpush1.bf16.msra.mxu0 %v510
        %530 = vmatprep.subr.bf16.mxu0 0
        %531 = vmatpush1.bf16.msra.mxu0 %v511
        %532 = vmatprep.subr.bf16.mxu0 0
        %533 = vmatpush1.bf16.msra.mxu0 %v512
        %534 = vmatprep.subr.bf16.mxu0 0
        %535 = vmatpush1.bf16.msra.mxu0 %v513
        %536 = vmatprep.subr.bf16.mxu0 0
        %537 = vmatpush1.bf16.msra.mxu0 %v514
        %538 = vmatprep.subr.bf16.mxu0 0
        %539 = vmatpush1.bf16.msra.mxu0 %v515
        %540 = vmatprep.subr.bf16.mxu0 0
        %541 = vmatpush1.bf16.msra.mxu0 0
        %542 = vmatprep.subr.bf16.mxu0 0
        %543 = vmatpush1.bf16.msra.mxu0 0
        %544 = vmatprep.subr.bf16.mxu0 0
        %545 = vmatpush1.bf16.msra.mxu0 0
        %546 = vmatprep.subr.bf16.mxu0 0
        %547 = vmatpush1.bf16.msra.mxu0 0
        %548 = vmatprep.subr.bf16.mxu0 0
        %549 = vmatpush1.bf16.msra.mxu0 0
        %550 = vmatprep.subr.bf16.mxu0 0
        %551 = vmatpush1.bf16.msra.mxu0 0
        %552 = vmatprep.subr.bf16.mxu0 0
        %553 = vmatpush1.bf16.msra.mxu0 0
        %554 = vmatprep.subr.bf16.mxu0 0
        %555 = vmatpush1.bf16.msra.mxu0 0
        %556 = vmatprep.mubr.bf16.mxu0 0
        %557 = vmatmul.mubr.bf16.gmra.mrb[0].mxu0 %v473
        %v558 = vpop.f32.mrb[0].mxu0
        %v559 = vadd.f32 0.0, %v558
        %v560 = vpop.f32.mrb[0].mxu0
        %v561 = vpop.f32.mrb[0].mxu0
        %v562 = vpop.f32.mrb[0].mxu0
        %563 = vdwg.mxu0
        %v564 = vadd.f32 %v475, %v559
        %565 = vst.msk [vmem:[%s336] sm:$0xff] %vm428, %v564
        // Predicated region
        $region57: #{msae_forward.1} parent=47 // pred_check
          %p566 = pneg %p361
        $region58: #{msae_forward.1} parent=47 // pred_check_branch
          %568 = sbr.rel (%p566) target = $region60
        $region59: #{msae_forward.1} parent=47 // pred_region
          %s569 = sld [smem:[#allocation3 + $0x1]]
          %v570 = vld [vmem:[%s336] sm:$0xff]
          %v571 = vstv %s569
          %v572 = vmul.f32 %v570, %v571
          %v573 = vld [vmem:[%s6] sm:$0x1]
          %v575 = vlaneseq
          %v576 = vshrl.u32 %v575, 7
          %v577 = vsub.s32 0, %v576
          %v578 = vrot.slane %v573, %v577
          %v580 = vadd.f32 %v572, %v578
          %581 = vst.msk [vmem:[%s336] sm:$0xff] %vm428, %v580
        $region60: #{msae_forward.1} parent=47 // pred_fallthru
          _
        %s582 = sand.u32 %s201, 1
        %s583 = scalar_lea.sflag [#allocation4], %s582
        %s584 = sand.u32 %s201, 1
        %s585 = smul.addr %s584, 8
        %s586 = scalar_lea.vmem [#allocation6], %s585
        %p587 = scmp.lt.s32.totalorder %s28, 1
        %s588 = scalar_select %p587, %s28, 1
        %p589 = scmp.lt.s32.totalorder %s29, 0
        %s590 = scalar_select %p589, %s29, 0
        %s591 = sadd.s32 %s590, %s588
        %s592 = smul.addr %s591, 4
        %s593 = scalar_lea.vmem %s8, %s592
        // Predicated region
        $region61: #{msae_forward.1} parent=47 // pred_check
          %p594 = pneg %p211
        $region62: #{msae_forward.1} parent=47 // pred_check_branch
          %596 = sbr.rel (%p594) target = $region64
        $region63: #{msae_forward.1} parent=47 // pred_region
          %s598 = ssub.s32 128, 128
          %599 = vsyncadd %s583, %s598
          %s600 = smul.addr %s28, 128
          %s601 = scalar_lea.hbm %s7, %s600
          %s603 = sshll.u32 %s586, 4
          %s604 = int_to_ptr.vmem [resolvable:$true] %s603
          %606 = dma.vmem_to_hbm [thread:$0]  %s604, 128, %s601, %s583
        $region64: #{msae_forward.1} parent=47 // pred_fallthru
          _
        // Predicated region
        $region65: #{msae_forward.1} parent=47 // pred_check
          %p607 = pneg %p239
        $region66: #{msae_forward.1} parent=47 // pred_check_branch
          %609 = sbr.rel (%p607) target = $region68
        $region67: #{msae_forward.1} parent=47 // pred_region
          _
        $region68: #{msae_forward.1} parent=47 // pred_fallthru
          _
      $region48: #{msae_forward.1} parent=5 // pred_fallthru
        _
      %p610 = scmp.le.s32.totalorder 2, %s19
      // Predicated region
      $region69: #{msae_forward.1} parent=5 // pred_check
        %p611 = pneg %p610
      $region70: #{msae_forward.1} parent=5 // pred_check_branch
        %613 = sbr.rel (%p611) target = $region72
      $region71: #{msae_forward.1} parent=5 // pred_region
        %s614 = ssub.s32 %s19, 2
        // Predicated region
        $region73: #{msae_forward.1} parent=71 // pred_check
          %p615 = pneg %p217
        $region74: #{msae_forward.1} parent=71 // pred_check_branch
          %617 = sbr.rel (%p615) target = $region76
        $region75: #{msae_forward.1} parent=71 // pred_region
          %s618 = sand.u32 %s202, 1
          %s619 = scalar_lea.sflag [#allocation4], %s618
          %s620 = sand.u32 %s202, 1
          %s621 = smul.addr %s620, 8
          %s622 = scalar_lea.vmem [#allocation6], %s621
          %623 = dma.done %s619, 128
        $region76: #{msae_forward.1} parent=71 // pred_fallthru
          _
        // Predicated region
        $region77: #{msae_forward.1} parent=71 // pred_check
          %p624 = pneg %p245
        $region78: #{msae_forward.1} parent=71 // pred_check_branch
          %626 = sbr.rel (%p624) target = $region80
        $region79: #{msae_forward.1} parent=71 // pred_region
          %p627 = scmp.lt.s32.totalorder %s30, 1
          %s628 = scalar_select %p627, %s30, 1
          %p629 = scmp.lt.s32.totalorder %s31, 0
          %s630 = scalar_select %p629, %s31, 0
          %s631 = sadd.s32 %s630, %s628
          %s632 = smul.addr %s631, 4
          %s633 = scalar_lea.vmem %s8, %s632
        $region80: #{msae_forward.1} parent=71 // pred_fallthru
          _
      $region72: #{msae_forward.1} parent=5 // pred_fallthru
        _
    $region6: #{msae_forward.1} parent=1 // loop_footer
      %s23 = sadd.s32 1, %s19
    $region7: #{msae_forward.1} parent=1 // loop_footer_branch
      %18 = sbr.rel target = $region3
    $region8: #{msae_forward.1} parent=1 // loop_exit
      _
    %634 = vsyncpa [#allocation4], 1
    %s635 = scalar_lea.sflag [#allocation4], 1
    %636 = vsyncpa %s635, 1
    %637 = vsyncpa [#allocation5], 1
    %s638 = scalar_lea.sflag [#allocation5], 1
    %639 = vsyncpa %s638, 1

</llo_original>
